<compile_context>
chip_gen: v7x
topology: tpu7x:2x2x1
jax: 0.10.0
libtpu: 0.0.40
codegen_flags: <defaults>
</compile_context>

<pallas_src>
import functools
import math

import jax
import jax.numpy as jnp
from jax import lax
from jax.experimental import pallas as pl
from jax.experimental.pallas import tpu as pltpu

LANE = 128
SUBL = 8
_EPS = 1e-4
_LOG_LO = -math.log(1.0 - _EPS)   # = -log(1 - eps) ~= 1.00005e-4
_LOG_HI = -math.log(_EPS)         # = -log(eps)     ~= 9.21034

BLOCK_ROWS_MAX = 2048             # (2048,128) f32 = 1 MiB per input per block
N_CHUNKS = 2                      # leading "parallel" axis -> both TCs on v7x
VMEM_LIMIT_BYTES = 32 * 1024 * 1024


def _round_up(v, m):
    return ((v + m - 1) // m) * m


def _focal_kernel(x_ref, t_ref, o_ref, acc_ref, *, gamma, inner, block_rows,
                  total, need_mask):
    c = pl.program_id(0)          # chunk axis ("parallel")
    i = pl.program_id(1)          # inner reduction axis ("arbitrary")

    @pl.when(i == 0)
    def _():
        acc_ref[...] = jnp.zeros_like(acc_ref)

    x = x_ref[...].astype(jnp.float32)
    t = t_ref[...].astype(jnp.float32)

    # sigmoid + both BCE log-terms with 3 EUP ops total (exp, reciprocal, log).
    e = jnp.exp(-jnp.abs(x))                      # EUP #1
    inv = 1.0 / (1.0 + e)                         # EUP #2
    p = jnp.where(x >= 0.0, inv, e * inv)         # == sigmoid(x), numerically stable
    p = jnp.clip(p, _EPS, 1.0 - _EPS)

    # softplus(+/-x) = relu(+/-x) + log(1 + e).  Since log is monotone, clamping p
    # to [eps, 1-eps] is identical to clamping the log terms to [_LOG_LO, _LOG_HI].
    # (log(1+e) vs log1p(e): any difference only matters for e < ~1e-4, where the
    #  term is clipped to _LOG_LO anyway.)
    l1p = jnp.log(1.0 + e)                        # EUP #3
    sp_neg = jnp.clip(jnp.maximum(-x, 0.0) + l1p, _LOG_LO, _LOG_HI)  # = -log(p)
    sp_pos = jnp.clip(jnp.maximum(x, 0.0) + l1p, _LOG_LO, _LOG_HI)   # = -log(1-p)

    ce = sp_pos + t * (sp_neg - sp_pos)           # -(t log p + (1-t) log(1-p))
    w = p + t * (1.0 - 2.0 * p)                   # = 1 - p_t

    g = float(gamma)
    if g == 2.0:
        focal = w * w                             # avoid pow -> exp/log on EUP
    elif g == 1.0:
        focal = w
    elif g == 0.0:
        focal = jnp.ones_like(w)
    else:
        focal = w ** g
    loss = focal * ce

    if need_mask:
        # Ragged-tail handling in-kernel: zero every element whose global index
        # is >= total (covers row-ragged last block, lane-ragged last row, and
        # phantom/duplicated trailing blocks of the chunked grid).
        blk = c * inner + i                       # intended (unclamped) block index
        row0 = blk * block_rows
        grow = row0 + lax.broadcasted_iota(jnp.int32, loss.shape, 0)
        full_rows = total // LANE
        valid = grow < full_rows
        rem = total % LANE
        if rem:
            glane = lax.broadcasted_iota(jnp.int32, loss.shape, 1)
            valid = valid | ((grow == full_rows) & (glane < rem))
        loss = jnp.where(valid, loss, 0.0)

    # Per-block partial sums stay vreg-shaped; cheap VPU adds in the hot loop,
    # the single cross-lane/sublane reduce happens only in the epilogue.
    if block_rows % SUBL == 0:
        acc_ref[...] += loss.reshape(block_rows // SUBL, SUBL, LANE).sum(axis=0)
    else:  # tiny single-block case (block == full row dim, rows % 8 != 0)
        acc_ref[...] += jnp.sum(loss, axis=0, keepdims=True)

    @pl.when(i == pl.num_programs(1) - 1)
    def _():
        o_ref[...] = jnp.sum(acc_ref[...]).reshape(1, 1)


def focal_loss_with_sigmoid(logits, target, *, gamma=2.0, reduction="mean",
                            block_rows_max=BLOCK_ROWS_MAX,
                            n_chunks_max=N_CHUNKS):
    """Forward pass of FocalLossWithSigmoid (weight=None)."""
    assert logits.shape == target.shape
    total = int(logits.size)

    x = logits.reshape(-1)           # native dtype; cast happens inside the kernel
    t = target.reshape(-1)

    # Only pad up to the next lane multiple (<=127 elems of padding); the padded
    # elements are zeroed by the in-kernel mask, so no analytic correction needed.
    padded_total = _round_up(total, LANE)
    if padded_total != total:
        x = jnp.pad(x, (0, padded_total - total))
        t = jnp.pad(t, (0, padded_total - total))

    rows = padded_total // LANE
    x = x.reshape(rows, LANE)
    t = t.reshape(rows, LANE)

    if rows <= block_rows_max:
        block_rows = rows            # block == full dim: always a legal BlockSpec
    else:
        block_rows = block_rows_max  # multiple of 8/16/32 -> fine for f32/bf16/i8

    num_blocks = (rows + block_rows - 1) // block_rows
    n_chunks = n_chunks_max if num_blocks >= n_chunks_max else 1
    inner = (num_blocks + n_chunks - 1) // n_chunks

    need_mask = (n_chunks * inner * block_rows * LANE) != total
    acc_rows = SUBL if block_rows % SUBL == 0 else 1

    last_blk = num_blocks - 1

    def in_map(c, i):
        # Clamp keeps the DMA of phantom trailing blocks in-bounds; their
        # contribution is zeroed by the in-kernel mask (intended index is used there).
        return (jnp.minimum(c * inner + i, last_blk), 0)

    in_blk = pl.BlockSpec((block_rows, LANE), in_map)
    out_blk = pl.BlockSpec((1, 1), lambda c, i: (c, 0))

    kernel = functools.partial(
        _focal_kernel, gamma=gamma, inner=inner, block_rows=block_rows,
        total=total, need_mask=need_mask)

    partials = pl.pallas_call(
        kernel,
        out_shape=jax.ShapeDtypeStruct((n_chunks, 1), jnp.float32),
        grid_spec=pltpu.PrefetchScalarGridSpec(
            num_scalar_prefetch=0,
            grid=(n_chunks, inner),
            in_specs=[in_blk, in_blk],
            out_specs=out_blk,
            scratch_shapes=[pltpu.VMEM((acc_rows, LANE), jnp.float32)],
        ),
        compiler_params=pltpu.CompilerParams(
            dimension_semantics=("parallel", "arbitrary"),
            vmem_limit_bytes=VMEM_LIMIT_BYTES,
        ),
    )(x, t)

    total_sum = jnp.sum(partials)

    if reduction == "mean":
        return total_sum / jnp.float32(total)
    elif reduction == "sum":
        return total_sum
    else:
        raise NotImplementedError(
            "reduction='none' not supported by this scalar-output kernel")


def _reference(logits, target, gamma=2.0):
    x = logits.astype(jnp.float32)
    t = target.astype(jnp.float32)
    p = jnp.clip(jax.nn.sigmoid(x), _EPS, 1.0 - _EPS)
    p_t = t * p + (1.0 - t) * (1.0 - p)
    ce = -(t * jnp.log(p) + (1.0 - t) * jnp.log(1.0 - p))
    return jnp.mean(((1.0 - p_t) ** gamma) * ce)


if __name__ == "__main__":
    key = jax.random.PRNGKey(0)
    k1, k2, k3, k4, k5, k6 = jax.random.split(key, 6)

    # 1) NCHW (2,4,16,16): lane-aligned total, single block, unmasked fast path.
    x1 = jax.random.normal(k1, (2, 4, 16, 16), dtype=jnp.float32) * 2.0
    t1 = jax.random.bernoulli(k2, 0.3, (2, 4, 16, 16)).astype(jnp.float32)
    l1 = jax.block_until_ready(focal_loss_with_sigmoid(x1, t1, gamma=2.0))
    r1 = _reference(x1, t1, gamma=2.0)
    assert jnp.allclose(l1, r1, rtol=2e-5, atol=1e-6), (l1, r1)

    # 2) Ragged total (not a multiple of 128): in-kernel tail-mask path.
    x2 = jax.random.normal(k3, (3, 5, 17, 19), dtype=jnp.float32)
    t2 = jax.random.bernoulli(k4, 0.4, (3, 5, 17, 19)).astype(jnp.float32)
    l2 = jax.block_until_ready(focal_loss_with_sigmoid(x2, t2))
    r2 = _reference(x2, t2)
    assert jnp.allclose(l2, r2, rtol=2e-5, atol=1e-6), (l2, r2)

    # 3) Multi-block + 2 chunks + row-ragged last block + phantom trailing block
    #    (tiny blocks force the full grid machinery on a small input).
    x3 = jax.random.normal(k5, (2, 2, 41, 41), dtype=jnp.float32)
    t3 = jax.random.bernoulli(k6, 0.5, (2, 2, 41, 41)).astype(jnp.float32)
    l3 = jax.block_until_ready(
        focal_loss_with_sigmoid(x3, t3, block_rows_max=8, n_chunks_max=2))
    r3 = _reference(x3, t3)
    assert jnp.allclose(l3, r3, rtol=2e-5, atol=1e-6), (l3, r3)

    # 4) bf16 logits streamed natively (cast to f32 inside the kernel).
    x4 = x1.astype(jnp.bfloat16)
    l4 = jax.block_until_ready(focal_loss_with_sigmoid(x4, t1))
    r4 = _reference(x4, t1)
    assert jnp.allclose(l4, r4, rtol=2e-5, atol=1e-6), (l4, r4)

    print("KERNEL_OK")
</pallas_src>

<mosaic_0001>
module attributes {stable_mosaic.version = 11 : i64} {
  func.func @_focal_kernel(%arg0: i32, %arg1: i32, %arg2: memref<16x128xf32, #tpu.memory_space<vmem>>, %arg3: memref<16x128xf32, #tpu.memory_space<vmem>>, %arg4: memref<1x1xf32, #tpu.memory_space<vmem>>, %arg5: memref<8x128xf32, #tpu.memory_space<vmem>>) attributes {dimension_semantics = [#tpu.dimension_semantics<parallel>, #tpu.dimension_semantics<arbitrary>], iteration_bounds = array<i64: 1, 1>, scalar_prefetch = 0 : i64, scratch_operands = 1 : i64, tpu.core_type = #tpu.core_type<tc>, window_params = [{transform_indices = @transform_0, window_bounds = array<i64: 16, 128>}, {transform_indices = @transform_1, window_bounds = array<i64: 16, 128>}, {transform_indices = @transform_2, window_bounds = array<i64: 1, 1>}]} {
    %c0_i32 = arith.constant 0 : i32
    %0 = arith.cmpi eq, %arg1, %c0_i32 : i32
    %1 = arith.extui %0 : i1 to i32
    %c0_i32_0 = arith.constant 0 : i32
    %2 = arith.cmpi ne, %1, %c0_i32_0 : i32
    scf.if %2 {
      %cst_26 = arith.constant 0.000000e+00 : f32
      %59 = vector.broadcast %cst_26 : f32 to vector<8x128xf32>
      %c0_27 = arith.constant 0 : index
      %c0_28 = arith.constant 0 : index
      %60 = vector.load %arg5[%c0_27, %c0_28] : memref<8x128xf32, #tpu.memory_space<vmem>>, vector<8x128xf32>
      tpu.vector_store %arg5[%c0_27, %c0_28], %59 {strides = array<i32>} : memref<8x128xf32, #tpu.memory_space<vmem>>, vector<8x128xf32>,
    } else {
    }
    %c0 = arith.constant 0 : index
    %c0_1 = arith.constant 0 : index
    %3 = vector.load %arg2[%c0, %c0_1] : memref<16x128xf32, #tpu.memory_space<vmem>>, vector<16x128xf32>
    %c0_2 = arith.constant 0 : index
    %c0_3 = arith.constant 0 : index
    %4 = vector.load %arg3[%c0_2, %c0_3] : memref<16x128xf32, #tpu.memory_space<vmem>>, vector<16x128xf32>
    %5 = math.absf %3 : vector<16x128xf32>
    %cst = arith.constant 0.000000e+00 : f32
    %6 = vector.broadcast %cst : f32 to vector<16x128xf32>
    %7 = arith.subf %6, %5 : vector<16x128xf32>
    %8 = math.exp %7 : vector<16x128xf32>
    %cst_4 = arith.constant 1.000000e+00 : f32
    %9 = vector.broadcast %cst_4 : f32 to vector<16x128xf32>
    %10 = arith.addf %9, %8 : vector<16x128xf32>
    %cst_5 = arith.constant 1.000000e+00 : f32
    %11 = vector.broadcast %cst_5 : f32 to vector<16x128xf32>
    %12 = arith.divf %11, %10 : vector<16x128xf32>
    %cst_6 = arith.constant 0.000000e+00 : f32
    %13 = vector.broadcast %cst_6 : f32 to vector<16x128xf32>
    %14 = arith.cmpf oge, %3, %13 : vector<16x128xf32>
    %15 = arith.mulf %8, %12 : vector<16x128xf32>
    %16 = arith.select %14, %12, %15 : vector<16x128xi1>, vector<16x128xf32>
    %cst_7 = arith.constant 9.99999974E-5 : f32
    %cst_8 = arith.constant 0.999899983 : f32
    %17 = vector.broadcast %cst_7 : f32 to vector<16x128xf32>
    %18 = arith.maximumf %17, %16 : vector<16x128xf32>
    %19 = vector.broadcast %cst_8 : f32 to vector<16x128xf32>
    %20 = arith.minimumf %19, %18 : vector<16x128xf32>
    %cst_9 = arith.constant 1.000000e+00 : f32
    %21 = vector.broadcast %cst_9 : f32 to vector<16x128xf32>
    %22 = arith.addf %21, %8 : vector<16x128xf32>
    %23 = math.log %22 : vector<16x128xf32>
    %cst_10 = arith.constant 0.000000e+00 : f32
    %24 = vector.broadcast %cst_10 : f32 to vector<16x128xf32>
    %25 = arith.subf %24, %3 : vector<16x128xf32>
    %cst_11 = arith.constant 0.000000e+00 : f32
    %26 = vector.broadcast %cst_11 : f32 to vector<16x128xf32>
    %27 = arith.maximumf %25, %26 : vector<16x128xf32>
    %28 = arith.addf %27, %23 : vector<16x128xf32>
    %cst_12 = arith.constant 1.000050e-04 : f32
    %cst_13 = arith.constant 9.21034049 : f32
    %29 = vector.broadcast %cst_12 : f32 to vector<16x128xf32>
    %30 = arith.maximumf %29, %28 : vector<16x128xf32>
    %31 = vector.broadcast %cst_13 : f32 to vector<16x128xf32>
    %32 = arith.minimumf %31, %30 : vector<16x128xf32>
    %cst_14 = arith.constant 0.000000e+00 : f32
    %33 = vector.broadcast %cst_14 : f32 to vector<16x128xf32>
    %34 = arith.maximumf %3, %33 : vector<16x128xf32>
    %35 = arith.addf %34, %23 : vector<16x128xf32>
    %cst_15 = arith.constant 1.000050e-04 : f32
    %cst_16 = arith.constant 9.21034049 : f32
    %36 = vector.broadcast %cst_15 : f32 to vector<16x128xf32>
    %37 = arith.maximumf %36, %35 : vector<16x128xf32>
    %38 = vector.broadcast %cst_16 : f32 to vector<16x128xf32>
    %39 = arith.minimumf %38, %37 : vector<16x128xf32>
    %40 = arith.subf %32, %39 : vector<16x128xf32>
    %41 = arith.mulf %4, %40 : vector<16x128xf32>
    %42 = arith.addf %39, %41 : vector<16x128xf32>
    %cst_17 = arith.constant 2.000000e+00 : f32
    %43 = vector.broadcast %cst_17 : f32 to vector<16x128xf32>
    %44 = arith.mulf %43, %20 : vector<16x128xf32>
    %cst_18 = arith.constant 1.000000e+00 : f32
    %45 = vector.broadcast %cst_18 : f32 to vector<16x128xf32>
    %46 = arith.subf %45, %44 : vector<16x128xf32>
    %47 = arith.mulf %4, %46 : vector<16x128xf32>
    %48 = arith.addf %20, %47 : vector<16x128xf32>
    %49 = arith.mulf %48, %48 : vector<16x128xf32>
    %50 = arith.mulf %49, %42 : vector<16x128xf32>
    %c0_19 = arith.constant 0 : index
    %c0_20 = arith.constant 0 : index
    %51 = vector.load %arg5[%c0_19, %c0_20] : memref<8x128xf32, #tpu.memory_space<vmem>>, vector<8x128xf32>
    %52 = vector.shape_cast %50 : vector<16x128xf32> to vector<2x8x128xf32>
    %cst_21 = arith.constant dense<0.000000e+00> : vector<8x128xf32>
    %53 = vector.multi_reduction <add>, %52, %cst_21 [0] : vector<2x8x128xf32> to vector<8x128xf32>
    %54 = arith.addf %51, %53 : vector<8x128xf32>
    %c0_22 = arith.constant 0 : index
    %c0_23 = arith.constant 0 : index
    %55 = vector.load %arg5[%c0_22, %c0_23] : memref<8x128xf32, #tpu.memory_space<vmem>>, vector<8x128xf32>
    tpu.vector_store %arg5[%c0_22, %c0_23], %54 {strides = array<i32>} : memref<8x128xf32, #tpu.memory_space<vmem>>, vector<8x128xf32>,
    %c0_i32_24 = arith.constant 0 : i32
    %56 = arith.cmpi eq, %arg1, %c0_i32_24 : i32
    %57 = arith.extui %56 : i1 to i32
    %c0_i32_25 = arith.constant 0 : i32
    %58 = arith.cmpi ne, %57, %c0_i32_25 : i32
    scf.if %58 {
      %c0_26 = arith.constant 0 : index
      %c0_27 = arith.constant 0 : index
      %59 = vector.load %arg5[%c0_26, %c0_27] : memref<8x128xf32, #tpu.memory_space<vmem>>, vector<8x128xf32>
      %60 = vector.shape_cast %59 : vector<8x128xf32> to vector<1x8x128xf32>
      %cst_28 = arith.constant dense<0.000000e+00> : vector<1xf32>
      %61 = vector.multi_reduction <add>, %60, %cst_28 [1, 2] : vector<1x8x128xf32> to vector<1xf32>
      %62 = vector.shape_cast %61 : vector<1xf32> to vector<1x1x1xf32>
      %63 = vector.extract %62[0, 0, 0] : f32 from vector<1x1x1xf32>
      %64 = vector.broadcast %63 : f32 to vector<1x1xf32>
      %c0_29 = arith.constant 0 : index
      %c0_30 = arith.constant 0 : index
      %65 = vector.load %arg4[%c0_29, %c0_30] : memref<1x1xf32, #tpu.memory_space<vmem>>, vector<1x1xf32>
      tpu.vector_store %arg4[%c0_29, %c0_30], %64 {strides = array<i32>} : memref<1x1xf32, #tpu.memory_space<vmem>>, vector<1x1xf32>,
    } else {
    }
    return
  }
  func.func @transform_0(%arg0: i32, %arg1: i32) -> (i32, i32) {
    %c1_i32 = arith.constant 1 : i32
    %0 = arith.muli %arg0, %c1_i32 : i32
    %1 = arith.addi %0, %arg1 : i32
    %c0_i32 = arith.constant 0 : i32
    %2 = arith.minsi %1, %c0_i32 : i32
    %c0_i32_0 = arith.constant 0 : i32
    %c0_i32_1 = arith.constant 0 : i32
    return %2, %c0_i32_0 : i32, i32
  }
  func.func @transform_1(%arg0: i32, %arg1: i32) -> (i32, i32) {
    %c1_i32 = arith.constant 1 : i32
    %0 = arith.muli %arg0, %c1_i32 : i32
    %1 = arith.addi %0, %arg1 : i32
    %c0_i32 = arith.constant 0 : i32
    %2 = arith.minsi %1, %c0_i32 : i32
    %c0_i32_0 = arith.constant 0 : i32
    %c0_i32_1 = arith.constant 0 : i32
    return %2, %c0_i32_0 : i32, i32
  }
  func.func @transform_2(%arg0: i32, %arg1: i32) -> (i32, i32) {
    %c0_i32 = arith.constant 0 : i32
    %c0_i32_0 = arith.constant 0 : i32
    return %arg0, %c0_i32 : i32, i32
  }
}

</mosaic_0001>

<llo_original>
// kernel: tpu_custom_call.1
$region0: #{tpu_custom_call.1}
  #allocation0 [shape = 'u32[]', space=smem, size = 0x4, offset = 0x4, fixed_abs, tag = 'smem constant byte address 0x4 - core index']
  #allocation1 [shape = 'u32[144,128]{1,0:T(1,128)}', space=vmem, size = 0x12000, scoped, tag = 'internal scratch']
  #allocation2 [shape = 'f32[8,128]{1,0:T(8,128)}', space=vmem, size = 0x1000, scoped, tag = 'scratch operand']
  %s0 = inlined_call_operand.hbm [shape: f32[16,128], index: 0, kind: input, shape index: {}]
  %s1 = inlined_call_operand.hbm [shape: f32[16,128], index: 1, kind: input, shape index: {}]
  %s2 = inlined_call_operand.hbm [shape: f32[1,1], index: 2, kind: output, shape index: {}]
  %s3 = sld [smem:[#allocation0]]
  $region34: #{tpu_custom_call.1} parent=0
    _
  %s5 = ssub.s32 1, %s3
  %s6 = scalar_select 0, %s5, %s3
  $region1: #{tpu_custom_call.1} parent=0
    #allocation3 [shape = 'u8[8192]{0}', space=vmem, size = 0x2000, scoped, tag = 'input window, operand 0, single buffered']
    #allocation4 [shape = 's32[1]{0}', space=sflag, size = 0x4, scoped, tag = 'scoped memory for tpu_custom_call.1']
    #allocation5 [shape = 's32[1]{0}', space=sflag, size = 0x4, scoped, tag = 'scoped memory for tpu_custom_call.1']
    #allocation6 [shape = 'u8[8192]{0}', space=vmem, size = 0x2000, scoped, tag = 'input window, operand 1, single buffered']
    #allocation7 [shape = 's32[1]{0}', space=sflag, size = 0x4, scoped, tag = 'scoped memory for tpu_custom_call.1']
    #allocation8 [shape = 'u8[512]{0}', space=vmem, size = 0x400, scoped, tag = 'output window, operand 0, single buffered']
    %7 = vsyncpa [#allocation4], 0
    %8 = vsyncpa [#allocation7], 0
    %9 = vsyncpa [#allocation5], 0
    // Predicated region
    $region2: #{tpu_custom_call.1} parent=1 // pred_check
      _
    $region3: #{tpu_custom_call.1} parent=1 // pred_check_branch
      %11 = sbr.rel (0) target = $region5
    $region4: #{tpu_custom_call.1} parent=1 // pred_region
      %s12 = sadd.s32 0, 0
      %p13 = scmp.lt.s32.totalorder %s12, 0
      %s14 = scalar_select %p13, %s12, 0
      %s15 = smul.u32 2, %s14
      %s17 = ssub.s32 256, 256
      %18 = vsyncadd [#allocation4], %s17
      %s19 = smul.addr %s15, 128
      %s20 = scalar_lea.hbm %s0, %s19
      %s21 = sshll.u32 [#allocation3], 4
      %s22 = int_to_ptr.vmem [resolvable:$true] %s21
      %27 = dma.hbm_to_vmem [thread:$0]  %s20, 256, %s22, [#allocation4], 128, 128, 8
    $region5: #{tpu_custom_call.1} parent=1 // pred_fallthru
      _
    // Predicated region
    $region6: #{tpu_custom_call.1} parent=1 // pred_check
      _
    $region7: #{tpu_custom_call.1} parent=1 // pred_check_branch
      %29 = sbr.rel (0) target = $region9
    $region8: #{tpu_custom_call.1} parent=1 // pred_region
      %s30 = sadd.s32 0, 0
      %p31 = scmp.lt.s32.totalorder %s30, 0
      %s32 = scalar_select %p31, %s30, 0
      %s33 = smul.u32 2, %s32
      %s35 = ssub.s32 256, 256
      %36 = vsyncadd [#allocation7], %s35
      %s37 = smul.addr %s33, 128
      %s38 = scalar_lea.hbm %s1, %s37
      %s39 = sshll.u32 [#allocation6], 4
      %s40 = int_to_ptr.vmem [resolvable:$true] %s39
      %45 = dma.hbm_to_vmem [thread:$0]  %s38, 256, %s40, [#allocation7], 128, 128, 8
    $region9: #{tpu_custom_call.1} parent=1 // pred_fallthru
      _
    // Predicated region
    $region10: #{tpu_custom_call.1} parent=1 // pred_check
      _
    $region11: #{tpu_custom_call.1} parent=1 // pred_check_branch
      %47 = sbr.rel (0) target = $region13
    $region12: #{tpu_custom_call.1} parent=1 // pred_region
      %48 = dma.done [#allocation4], 256
    $region13: #{tpu_custom_call.1} parent=1 // pred_fallthru
      _
    // Predicated region
    $region14: #{tpu_custom_call.1} parent=1 // pred_check
      _
    $region15: #{tpu_custom_call.1} parent=1 // pred_check_branch
      %50 = sbr.rel (0) target = $region17
    $region16: #{tpu_custom_call.1} parent=1 // pred_region
      %51 = dma.done [#allocation7], 256
    $region17: #{tpu_custom_call.1} parent=1 // pred_fallthru
      _
    %s52 = sadd.s32 0, 0
    %p53 = scmp.lt.s32.totalorder %s52, 0
    %s54 = scalar_select %p53, %s52, 0
    %s55 = smul.u32 2, %s54
    %s56 = sadd.s32 0, 0
    %p57 = scmp.lt.s32.totalorder %s56, 0
    %s58 = scalar_select %p57, %s56, 0
    %s59 = smul.u32 2, %s58
    %p60 = scmp.eq.s32.totalorder 0, 0
    // Predicated region
    $region18: #{tpu_custom_call.1} parent=1 // pred_check
      %p61 = pneg %p60
    $region19: #{tpu_custom_call.1} parent=1 // pred_check_branch
      %63 = sbr.rel (%p61) target = $region21
    $region20: #{tpu_custom_call.1} parent=1 // pred_region
      %64 = vst [vmem:[#allocation2] sm:$0xff] 0.0
    $region21: #{tpu_custom_call.1} parent=1 // pred_fallthru
      _
    %v65 = vld [vmem:[#allocation3] sm:$0xff]
    %v66 = vld [vmem:[#allocation3 + $0x8] sm:$0xff]
    %v67 = vld [vmem:[#allocation6] sm:$0xff]
    %v68 = vld [vmem:[#allocation6 + $0x8] sm:$0xff]
    %v69 = vand.u32 2147483647, %v65
    %v70 = vand.u32 2147483647, %v66
    %v71 = vsub.f32 0.0, %v69
    %v72 = vsub.f32 0.0, %v70
    %v73 = vmul.f32 %v71, 1.442695
    %v74 = vpow.pop %v73
    %v75 = vmul.f32 %v72, 1.442695
    %v76 = vpow.pop %v75
    %v77 = vadd.f32 %v74, 1.0
    %v78 = vadd.f32 %v76, 1.0
    %v79 = vrcp.pop %v77
    %v80 = vmul.f32 1.0, %v79
    %v81 = vrcp.pop %v78
    %v82 = vmul.f32 1.0, %v81
    %vm83 = vcmp.ge.f32.partialorder %v65, 0.0
    %vm84 = vcmp.ge.f32.partialorder %v66, 0.0
    %v85 = vmul.f32 %v74, %v80
    %v86 = vmul.f32 %v76, %v82
    %v87 = vsel %vm83, %v80, %v85
    %v88 = vsel %vm84, %v82, %v86
    %v89 = vmax.f32 %v87, 0.0001
    %v90 = vmax.f32 %v88, 0.0001
    %v91 = vmin.f32 %v89, 0.9999
    %v92 = vmin.f32 %v90, 0.9999
    %v93 = vlog2.pop %v77
    %v94 = vmul.f32 %v93, 0.6931472
    %v95 = vlog2.pop %v78
    %v96 = vmul.f32 %v95, 0.6931472
    %v97 = vsub.f32 0.0, %v65
    %v98 = vsub.f32 0.0, %v66
    %v99 = vmax.f32 %v97, 0.0
    %v100 = vmax.f32 %v98, 0.0
    %v101 = vadd.f32 %v99, %v94
    %v102 = vadd.f32 %v100, %v96
    %v103 = vmax.f32 %v101, 0.000100005
    %v104 = vmax.f32 %v102, 0.000100005
    %v105 = vmin.f32 %v103, 9.2103405
    %v106 = vmin.f32 %v104, 9.2103405
    %v107 = vmax.f32 %v65, 0.0
    %v108 = vmax.f32 %v66, 0.0
    %v109 = vadd.f32 %v107, %v94
    %v110 = vadd.f32 %v108, %v96
    %v111 = vmax.f32 %v109, 0.000100005
    %v112 = vmax.f32 %v110, 0.000100005
    %v113 = vmin.f32 %v111, 9.2103405
    %v114 = vmin.f32 %v112, 9.2103405
    %v115 = vsub.f32 %v105, %v113
    %v116 = vsub.f32 %v106, %v114
    %v117 = vmul.f32 %v67, %v115
    %v118 = vmul.f32 %v68, %v116
    %v119 = vadd.f32 %v113, %v117
    %v120 = vadd.f32 %v114, %v118
    %v121 = vmul.f32 %v91, 2.0
    %v122 = vmul.f32 %v92, 2.0
    %v123 = vsub.f32 1.0, %v121
    %v124 = vsub.f32 1.0, %v122
    %v125 = vmul.f32 %v67, %v123
    %v126 = vmul.f32 %v68, %v124
    %v127 = vadd.f32 %v91, %v125
    %v128 = vadd.f32 %v92, %v126
    %v129 = vmul.f32 %v127, %v127
    %v130 = vmul.f32 %v128, %v128
    %v131 = vmul.f32 %v129, %v119
    %v132 = vmul.f32 %v130, %v120
    %v133 = vld [vmem:[#allocation2] sm:$0xff]
    %v134 = vadd.f32 %v131, %v132
    %v135 = vadd.f32 %v133, %v134
    %136 = vst [vmem:[#allocation2] sm:$0xff] %v135
    // Predicated region
    $region22: #{tpu_custom_call.1} parent=1 // pred_check
      %p137 = pneg %p60
    $region23: #{tpu_custom_call.1} parent=1 // pred_check_branch
      %139 = sbr.rel (%p137) target = $region25
    $region24: #{tpu_custom_call.1} parent=1 // pred_region
      %v140 = vld [vmem:[#allocation2] sm:$0xff]
      %141 = vadd.xlane.f32.xlu0 %v140
      %v142 = vpop.xlane.xlu0 %141
      %v143 = vrot.slane %v142, 4
      %v144 = vadd.f32 %v142, %v143
      %v145 = vrot.slane %v144, 2
      %v146 = vadd.f32 %v144, %v145
      %v147 = vrot.slane %v146, 1
      %v148 = vadd.f32 %v146, %v147
      %s149 = vtos %v148
      %v150 = vstv %s149
      %vm151 = vcmask 0
      %152 = vst.msk [vmem:[#allocation8] sm:$0x1] %vm151, %v150
    $region25: #{tpu_custom_call.1} parent=1 // pred_fallthru
      _
    // Predicated region
    $region26: #{tpu_custom_call.1} parent=1 // pred_check
      _
    $region27: #{tpu_custom_call.1} parent=1 // pred_check_branch
      %154 = sbr.rel (0) target = $region29
    $region28: #{tpu_custom_call.1} parent=1 // pred_region
      %s156 = ssub.s32 16, 16
      %157 = vsyncadd [#allocation5], %s156
      %s159 = sshll.u32 [#allocation8], 4
      %s160 = int_to_ptr.vmem [resolvable:$true] %s159
      %162 = dma.vmem_to_hbm [thread:$0]  %s160, 16, %s2, [#allocation5]
    $region29: #{tpu_custom_call.1} parent=1 // pred_fallthru
      _
    // Predicated region
    $region30: #{tpu_custom_call.1} parent=1 // pred_check
      _
    $region31: #{tpu_custom_call.1} parent=1 // pred_check_branch
      %164 = sbr.rel (0) target = $region33
    $region32: #{tpu_custom_call.1} parent=1 // pred_region
      %165 = dma.done [#allocation5], 16
    $region33: #{tpu_custom_call.1} parent=1 // pred_fallthru
      _
    %166 = vsyncpa [#allocation4], 1
    %167 = vsyncpa [#allocation7], 1
    %168 = vsyncpa [#allocation5], 1

</llo_original>
